<compile_context>
chip_gen: v7x
topology: tpu7x:2x2x1
jax: 0.10.0
libtpu: 0.0.40
codegen_flags: <defaults>
</compile_context>

<pallas_src>
import functools

import jax
import jax.numpy as jnp
from jax import lax
from jax.experimental import pallas as pl
from jax.experimental.pallas import tpu as pltpu

LN_EPS = 1e-5  # torch nn.LayerNorm default

# dot_general dimension numbers (rank-3, one batch dim -> Mosaic-friendly)
_DN_PROJ = (((2,), (1,)), ((0,), (0,)))   # [b,m,k] x [b,k,n] -> [b,m,n]
_DN_QK   = (((2,), (2,)), ((0,), (0,)))   # [b,m,k] x [b,n,k] -> [b,m,n]


def _round_up(x, m):
    return (x + m - 1) // m * m


# ----------------------------- hardware-aware sizing --------------------------
@functools.lru_cache(maxsize=None)
def _vmem_capacity_bytes():
    try:
        cap = getattr(pltpu.get_tpu_info(), "vmem_capacity_bytes", None)
    except Exception:
        cap = None
    return int(cap) if cap else 0


def _vmem_limit_bytes():
    cap = _vmem_capacity_bytes()
    if not cap:
        return 48 * 1024 * 1024                       # safe on every generation
    return int(min(max(cap - 16 * 1024 * 1024, 32 * 1024 * 1024), 96 * 1024 * 1024))


def _target_rows():
    return 1024 if _vmem_capacity_bytes() >= 100 * 1024 * 1024 else 256


def _batch_tile(batch, seq):
    """Batch tile so each grid step works on ~target token rows; keep >=2 steps."""
    target_rows = _target_rows()
    bt = max(1, min(batch, max(1, target_rows // max(seq, 1))))
    while batch % bt:
        bt -= 1
    if batch >= 2 and batch // bt < 2:                # v7x megacore: >= 2 grid steps
        bt = max(1, bt // 2)
        while batch % bt:
            bt -= 1
    return bt


def _mlp_chunk(mlp):
    """Largest multiple-of-128 divisor of mlp below the target chunk width."""
    target = 1024 if _vmem_capacity_bytes() >= 100 * 1024 * 1024 else 512
    if mlp <= target:
        return mlp
    for cand in range(target, 127, -128):
        if mlp % cand == 0:
            return cand
    return mlp


def _row_tile(batch):
    if batch <= 512:
        return batch
    for rb in range(512, 7, -8):
        if batch % rb == 0:
            return rb
    return batch


# ----------------------------- math helpers (in-kernel safe) ------------------
def _approx_recip(v):               # EUP reciprocal -- kernel-side only
    return pl.reciprocal(v, approx=True)


def _erf(x, recip):
    # Abramowitz & Stegun 7.1.26 (|err| < 1.5e-7) -> mul/add/exp/abs (+ recip).
    a1, a2, a3, a4, a5 = 0.254829592, -0.284496736, 1.421413741, -1.453152027, 1.061405429
    p = 0.3275911
    s = jnp.sign(x)
    z = jnp.abs(x)
    t = recip(1.0 + p * z)
    poly = ((((a5 * t + a4) * t + a3) * t + a2) * t + a1) * t
    return s * (1.0 - poly * jnp.exp(-z * z))


def _gelu(x, recip=lambda v: 1.0 / v):
    # torch nn.GELU() default = exact erf form.
    return 0.5 * x * (1.0 + _erf(x * 0.7071067811865476, recip))


def _layernorm(x, g, b):
    mu = jnp.mean(x, axis=-1, keepdims=True)
    var = jnp.mean((x - mu) ** 2, axis=-1, keepdims=True)
    return (x - mu) * lax.rsqrt(var + LN_EPS) * g + b


def _softmax_f32(x):                # reference softmax (exact divide)
    m = jnp.max(x, axis=-1, keepdims=True)
    e = jnp.exp(x - m)
    return e / jnp.sum(e, axis=-1, keepdims=True)


def _softmax_pallas(x):             # in-kernel softmax: divide -> EUP reciprocal
    m = jnp.max(x, axis=-1, keepdims=True)
    e = jnp.exp(x - m)
    return e * pl.reciprocal(jnp.sum(e, axis=-1, keepdims=True), approx=True)


# ----------------------------- patch embedding kernel -------------------------
def patch_embed_kernel(xp_ref, w_ref, bias_ref, o_ref):
    bt, n, p = xp_ref.shape
    d = w_ref.shape[1]
    x = xp_ref[...].reshape(bt * n, p).astype(jnp.bfloat16)          # bf16 MXU input
    y = jnp.dot(x, w_ref[...], preferred_element_type=jnp.float32)   # f32 accumulate
    o_ref[...] = y.reshape(bt, n, d) + bias_ref[...]                 # bias = b_patch + pos


def patch_embed(xp, w_bf16, bias, bt):
    B, N, P = xp.shape
    D = w_bf16.shape[1]
    return pl.pallas_call(
        patch_embed_kernel,
        out_shape=jax.ShapeDtypeStruct((B, N, D), jnp.float32),
        grid=(B // bt,),
        in_specs=[pl.BlockSpec((bt, N, P), lambda i: (i, 0, 0)),
                  pl.BlockSpec((P, D), lambda i: (0, 0)),
                  pl.BlockSpec((N, D), lambda i: (0, 0))],
        out_specs=pl.BlockSpec((bt, N, D), lambda i: (i, 0, 0)),
        compiler_params=pltpu.CompilerParams(
            dimension_semantics=("parallel",),
            vmem_limit_bytes=_vmem_limit_bytes()),
    )(xp, w_bf16, bias)


# ----------------------------- fused transformer layer kernel -----------------
def layer_kernel(heads, dim_head,
                 x_ref, g1_ref, be1_ref, wqkv_ref, wo_ref, bo_ref,
                 g2_ref, be2_ref, w1_ref, b1_ref, w2_ref, b2_ref,
                 o_ref, xn2_ref):
    bt, n, d = x_ref.shape
    rows = bt * n
    inner = heads * dim_head

    # ---- attention + output init: once per batch tile (mlp-chunk step 0) ----
    @pl.when(pl.program_id(1) == 0)
    def _attention_and_init():
        x = x_ref[...]                                           # [Bt, N, D] f32
        xn = _layernorm(x, g1_ref[...], be1_ref[...])
        xf = xn.reshape(rows, d).astype(jnp.bfloat16)            # [rows, D] bf16
        # fused QKV projection (scale pre-folded into the Q columns)
        qkv = jnp.dot(xf, wqkv_ref[...], preferred_element_type=jnp.float32)

        ctx_heads = []
        for h in range(heads):                                   # static unroll
            s = h * dim_head
            q = qkv[:, s:s + dim_head].reshape(bt, n, dim_head).astype(jnp.bfloat16)
            k = qkv[:, inner + s:inner + s + dim_head].reshape(bt, n, dim_head).astype(jnp.bfloat16)
            v = qkv[:, 2 * inner + s:2 * inner + s + dim_head].reshape(bt, n, dim_head).astype(jnp.bfloat16)
            dots = lax.dot_general(q, k, _DN_QK, preferred_element_type=jnp.float32)
            attn = _softmax_pallas(dots)                         # f32
            ctx = lax.dot_general(attn.astype(jnp.bfloat16), v, _DN_PROJ,
                                  preferred_element_type=jnp.float32)  # [Bt, N, dh]
            ctx_heads.append(ctx.reshape(rows, dim_head))
        ctx2d = jnp.concatenate(ctx_heads, axis=-1).astype(jnp.bfloat16)  # [rows, H*dh]

        # fused output projection (single K = H*dh matmul, no head-sum)
        attn_out = (jnp.dot(ctx2d, wo_ref[...], preferred_element_type=jnp.float32)
                    + bo_ref[...]).reshape(bt, n, d)
        xa = attn_out + x                                        # attention residual

        # cache LN(x_attn) for the chunked FFN (persists across chunk steps)
        xn2_ref[...] = _layernorm(xa, g2_ref[...], be2_ref[...]).reshape(rows, d).astype(jnp.bfloat16)
        # Transformer.forward: x = ff + x_attn + x1; fold the FFN bias in here.
        o_ref[...] = xa + x + b2_ref[...]

    # ---- FFN over one mlp chunk, accumulated into the resident f32 output ----
    hid = _gelu(jnp.dot(xn2_ref[...], w1_ref[...],
                        preferred_element_type=jnp.float32) + b1_ref[...],
                _approx_recip)
    o_ref[...] += jnp.dot(hid.astype(jnp.bfloat16), w2_ref[...],
                          preferred_element_type=jnp.float32).reshape(bt, n, d)


def transformer_layer(x, p, heads, dim_head, bt, mlp_chunk):
    B, N, D = x.shape
    mlp = p["w1"].shape[1]
    n_chunks = mlp // mlp_chunk
    rows = bt * N
    inner = heads * dim_head
    kernel = functools.partial(layer_kernel, heads, dim_head)

    def const(shape):
        return pl.BlockSpec(shape, lambda i, c: (0,) * len(shape))

    return pl.pallas_call(
        kernel,
        out_shape=jax.ShapeDtypeStruct((B, N, D), jnp.float32),
        grid=(B // bt, n_chunks),
        in_specs=[
            pl.BlockSpec((bt, N, D), lambda i, c: (i, 0, 0)),     # x (resident over c)
            const((1, D)), const((1, D)),                         # ln1 gamma/beta
            const((D, 3 * inner)),                                # fused W_qkv
            const((inner, D)), const((1, D)),                     # W_out, b_out
            const((1, D)), const((1, D)),                         # ln2 gamma/beta
            pl.BlockSpec((D, mlp_chunk), lambda i, c: (0, c)),    # W1 chunk
            pl.BlockSpec((1, mlp_chunk), lambda i, c: (0, c)),    # b1 chunk
            pl.BlockSpec((mlp_chunk, D), lambda i, c: (c, 0)),    # W2 chunk
            const((1, D)),                                        # b2
        ],
        out_specs=pl.BlockSpec((bt, N, D), lambda i, c: (i, 0, 0)),
        scratch_shapes=[pltpu.VMEM((rows, D), jnp.bfloat16)],     # cached LN(x_attn)
        compiler_params=pltpu.CompilerParams(
            dimension_semantics=("parallel", "arbitrary"),
            vmem_limit_bytes=_vmem_limit_bytes()),
    )(x, p["ln1_g"], p["ln1_b"], p["wqkv"], p["wo"], p["bo"],
      p["ln2_g"], p["ln2_b"], p["w1"], p["b1"], p["w2"], p["b2"])


# ----------------------------- mlp head kernel (lane-dense padded output) ------
def mlp_head_kernel(x_ref, g_ref, b_ref, w1_ref, b1_ref, w2_ref, b2_ref, o_ref):
    xn = _layernorm(x_ref[...], g_ref[...], b_ref[...]).astype(jnp.bfloat16)
    h = _gelu(jnp.dot(xn, w1_ref[...], preferred_element_type=jnp.float32) + b1_ref[...],
              _approx_recip)
    o_ref[...] = (jnp.dot(h.astype(jnp.bfloat16), w2_ref[...],
                          preferred_element_type=jnp.float32) + b2_ref[...])


def mlp_head(x, hp):
    B, D = x.shape
    Dh = hp["w1"].shape[1]
    Cp = hp["w2"].shape[1]          # padded to a multiple of 128 lanes
    rb = _row_tile(B)

    def const(shape):
        return pl.BlockSpec(shape, lambda i: (0,) * len(shape))

    return pl.pallas_call(
        mlp_head_kernel,
        out_shape=jax.ShapeDtypeStruct((B, Cp), jnp.float32),
        grid=(B // rb,),
        in_specs=[pl.BlockSpec((rb, D), lambda i: (i, 0)),
                  const((1, D)), const((1, D)),
                  const((D, Dh)), const((1, Dh)),
                  const((Dh, Cp)), const((1, Cp))],
        out_specs=pl.BlockSpec((rb, Cp), lambda i: (i, 0)),
        compiler_params=pltpu.CompilerParams(
            dimension_semantics=("parallel",),
            vmem_limit_bytes=_vmem_limit_bytes()),
    )(x, hp["ln_g"], hp["ln_b"], hp["w1"], hp["b1"], hp["w2"], hp["b2"])


# ----------------------------- full ViT forward (Pallas) ----------------------
def vit_forward(img, pp, cfg):
    B, C, H, W = img.shape
    ps = cfg["patch_size"]
    hh, ww = H // ps, W // ps
    N = hh * ww
    # 'b c (h p1) (w p2) -> b (h w) (p1 p2 c)'  (zero-compute layout glue, plain JAX)
    xp = (img.reshape(B, C, hh, ps, ww, ps)
             .transpose(0, 2, 4, 3, 5, 1)
             .reshape(B, N, ps * ps * C))
    bt = _batch_tile(B, N)
    x = patch_embed(xp, pp["w_patch"], pp["bias_embed"], bt)
    if pp["layers"]:
        mlp_chunk = _mlp_chunk(pp["layers"][0]["w1"].shape[1])
        for layer in pp["layers"]:
            x = transformer_layer(x, layer, cfg["heads"], cfg["dim_head"], bt, mlp_chunk)
    cls = x[:, 0]                                   # to_latent(x[:, 0]) — Identity
    logits = mlp_head(cls, pp["head"])
    return logits[:, :cfg["num_classes"]]           # drop lane padding


# ----------------------------- host-side parameter prep -----------------------
def prep_params(params, cfg):
    """Pre-cast weights to bf16, fuse QKV (scale folded into the Q columns),
    keep the output projection 2-D, pre-sum pos + patch bias, and pad the
    classifier to a lane-dense width."""
    heads, dh, D = cfg["heads"], cfg["dim_head"], cfg["dim"]
    inner = heads * dh
    scale = dh ** -0.5
    C = cfg["num_classes"]
    Cp = _round_up(C, 128)
    bf = lambda a: a.astype(jnp.bfloat16)

    hd = params["head"]
    pp = {
        "w_patch": bf(params["w_patch"]),
        "bias_embed": params["b_patch"] + params["pos"],            # [N, D] f32
        "layers": [],
        "head": {
            "ln_g": hd["ln_g"], "ln_b": hd["ln_b"],
            "w1": bf(hd["w1"]), "b1": hd["b1"],
            "w2": bf(jnp.pad(hd["w2"], ((0, 0), (0, Cp - C)))),
            "b2": jnp.pad(hd["b2"], ((0, 0), (0, Cp - C))),
        },
    }
    for p in params["layers"]:
        wqkv = p["w_qkv"]
        wqkv = jnp.concatenate([wqkv[:, :inner] * scale, wqkv[:, inner:]], axis=1)
        pp["layers"].append({
            "ln1_g": p["ln1_g"], "ln1_b": p["ln1_b"],
            "wqkv": bf(wqkv),                    # [D, 3*inner], scale folded into Q
            "wo": bf(p["w_out"]),                # [inner, D] (single fused out-proj)
            "bo": p["b_out"],
            "ln2_g": p["ln2_g"], "ln2_b": p["ln2_b"],
            "w1": bf(p["w1"]), "b1": p["b1"],
            "w2": bf(p["w2"]), "b2": p["b2"],
        })
    return pp


# ----------------------------- pure-JAX reference (same precision policy) -----
def ref_forward(img, pp, cfg):
    f32 = jnp.float32
    heads, dh = cfg["heads"], cfg["dim_head"]
    inner = heads * dh
    B, C, H, W = img.shape
    ps = cfg["patch_size"]
    hh, ww = H // ps, W // ps
    N = hh * ww
    xp = (img.reshape(B, C, hh, ps, ww, ps)
             .transpose(0, 2, 4, 3, 5, 1)
             .reshape(B, N, ps * ps * C))
    x = (jnp.einsum('bnp,pd->bnd', xp.astype(jnp.bfloat16), pp["w_patch"],
                    preferred_element_type=f32) + pp["bias_embed"])

    for p in pp["layers"]:
        x1 = x
        xn = _layernorm(x, p["ln1_g"], p["ln1_b"]).astype(jnp.bfloat16)
        qkv = jnp.einsum('bnd,de->bne', xn, p["wqkv"], preferred_element_type=f32)
        split = lambda t: t.reshape(B, N, heads, dh).transpose(0, 2, 1, 3)
        q = split(qkv[..., :inner])
        k = split(qkv[..., inner:2 * inner])
        v = split(qkv[..., 2 * inner:])
        dots = jnp.einsum('bhik,bhjk->bhij', q.astype(jnp.bfloat16),
                          k.astype(jnp.bfloat16), preferred_element_type=f32)
        attn = _softmax_f32(dots)
        ctx = jnp.einsum('bhij,bhjk->bhik', attn.astype(jnp.bfloat16),
                         v.astype(jnp.bfloat16), preferred_element_type=f32)
        ctx2 = ctx.transpose(0, 2, 1, 3).reshape(B, N, inner)
        proj = jnp.einsum('bni,id->bnd', ctx2.astype(jnp.bfloat16), p["wo"],
                          preferred_element_type=f32) + p["bo"]
        xa = proj + x
        xn2 = _layernorm(xa, p["ln2_g"], p["ln2_b"]).astype(jnp.bfloat16)
        hid = _gelu(jnp.einsum('bnd,dm->bnm', xn2, p["w1"],
                               preferred_element_type=f32) + p["b1"])
        ff = jnp.einsum('bnm,md->bnd', hid.astype(jnp.bfloat16), p["w2"],
                        preferred_element_type=f32) + p["b2"]
        x = ff + xa + x1

    cls = x[:, 0]
    hd = pp["head"]
    h1 = _gelu(jnp.dot(_layernorm(cls, hd["ln_g"], hd["ln_b"]).astype(jnp.bfloat16),
                       hd["w1"], preferred_element_type=f32) + hd["b1"])
    logits = jnp.dot(h1.astype(jnp.bfloat16), hd["w2"],
                     preferred_element_type=f32) + hd["b2"]
    return logits[:, :cfg["num_classes"]]


# ----------------------------- deterministic init ------------------------------
def init_params(key, cfg):
    D, heads, dh, mlp = cfg["dim"], cfg["heads"], cfg["dim_head"], cfg["mlp_dim"]
    inner = heads * dh
    num_patches = (cfg["image_size"] // cfg["patch_size"]) ** 2
    patch_dim = cfg["channels"] * cfg["patch_size"] ** 2
    scale = 0.02

    def nrm(k, shape):
        return (scale * jax.random.normal(k, shape)).astype(jnp.float32)

    keys = jax.random.split(key, 8 + cfg["depth"])
    params = {
        "w_patch": nrm(keys[0], (patch_dim, D)),
        "b_patch": nrm(keys[1], (1, D)),
        "pos": nrm(keys[2], (num_patches, D)),
        "layers": [],
        "head": {
            "ln_g": jnp.ones((1, D), jnp.float32),
            "ln_b": jnp.zeros((1, D), jnp.float32),
            "w1": nrm(keys[3], (D, D)),
            "b1": nrm(keys[4], (1, D)),
            "w2": nrm(keys[5], (D, cfg["num_classes"])),
            "b2": nrm(keys[6], (1, cfg["num_classes"])),
        },
    }
    for li in range(cfg["depth"]):
        lk = jax.random.split(keys[8 + li], 8)
        params["layers"].append({
            "ln1_g": jnp.ones((1, D), jnp.float32),
            "ln1_b": jnp.zeros((1, D), jnp.float32),
            "w_qkv": nrm(lk[0], (D, 3 * inner)),        # Linear(dim, inner*3, bias=False)
            "w_out": nrm(lk[1], (inner, D)),
            "b_out": nrm(lk[2], (1, D)),
            "ln2_g": jnp.ones((1, D), jnp.float32),
            "ln2_b": jnp.zeros((1, D), jnp.float32),
            "w1": nrm(lk[3], (D, mlp)),
            "b1": nrm(lk[4], (1, mlp)),
            "w2": nrm(lk[5], (mlp, D)),
            "b2": nrm(lk[6], (1, D)),
        })
    return params


if __name__ == "__main__":
    cfg = dict(image_size=16, patch_size=4, num_classes=8, dim=32, depth=2,
               heads=2, dim_head=16, mlp_dim=64, channels=4)

    key = jax.random.PRNGKey(0)
    k_img, k_params = jax.random.split(key)
    img = jax.random.normal(
        k_img, (2, cfg["channels"], cfg["image_size"], cfg["image_size"]),
        dtype=jnp.float32)                              # NCHW
    params = init_params(k_params, cfg)
    pp = prep_params(params, cfg)

    out = jax.block_until_ready(vit_forward(img, pp, cfg))
    ref = jax.block_until_ready(ref_forward(img, pp, cfg))

    assert out.shape == (2, cfg["num_classes"])
    assert jnp.allclose(out, ref, atol=1e-3, rtol=1e-3), (out, ref)
    print("KERNEL_OK")
</pallas_src>

<mosaic_0001>
module attributes {stable_mosaic.version = 11 : i64} {
  func.func @patch_embed_kernel(%arg0: i32, %arg1: memref<1x16x64xf32, #tpu.memory_space<vmem>>, %arg2: memref<64x32xbf16, #tpu.memory_space<vmem>>, %arg3: memref<16x32xf32, #tpu.memory_space<vmem>>, %arg4: memref<1x16x32xf32, #tpu.memory_space<vmem>>) attributes {dimension_semantics = [#tpu.dimension_semantics<parallel>], iteration_bounds = array<i64: 2>, scalar_prefetch = 0 : i64, scratch_operands = 0 : i64, tpu.core_type = #tpu.core_type<tc>, window_params = [{transform_indices = @transform_0, window_bounds = array<i64: 1, 16, 64>}, {pipeline_mode = #tpu.pipeline_mode<synchronous>, transform_indices = @transform_1, window_bounds = array<i64: 64, 32>}, {pipeline_mode = #tpu.pipeline_mode<synchronous>, transform_indices = @transform_2, window_bounds = array<i64: 16, 32>}, {transform_indices = @transform_3, window_bounds = array<i64: 1, 16, 32>}]} {
    %c0 = arith.constant 0 : index
    %c0_0 = arith.constant 0 : index
    %c0_1 = arith.constant 0 : index
    %0 = vector.load %arg1[%c0, %c0_0, %c0_1] : memref<1x16x64xf32, #tpu.memory_space<vmem>>, vector<1x16x64xf32>
    %1 = vector.shape_cast %0 : vector<1x16x64xf32> to vector<16x64xf32>
    %2 = arith.truncf %1 : vector<16x64xf32> to vector<16x64xbf16>
    %c0_2 = arith.constant 0 : index
    %c0_3 = arith.constant 0 : index
    %3 = vector.load %arg2[%c0_2, %c0_3] : memref<64x32xbf16, #tpu.memory_space<vmem>>, vector<64x32xbf16>
    %cst = arith.constant dense<0.000000e+00> : vector<16x32xf32>
    %4 = tpu.matmul %2, %3, %cst {dimension_numbers = #tpu.dot_dimension_numbers<[1], [0], [0], [1], [0, 0, 1, 1], [], []>} : vector<16x64xbf16>, vector<64x32xbf16>, vector<16x32xf32> -> vector<16x32xf32>
    %5 = vector.shape_cast %4 : vector<16x32xf32> to vector<1x16x32xf32>
    %c0_4 = arith.constant 0 : index
    %c0_5 = arith.constant 0 : index
    %6 = vector.load %arg3[%c0_4, %c0_5] : memref<16x32xf32, #tpu.memory_space<vmem>>, vector<16x32xf32>
    %7 = vector.shape_cast %6 : vector<16x32xf32> to vector<1x16x32xf32>
    %8 = arith.addf %5, %7 : vector<1x16x32xf32>
    %c0_6 = arith.constant 0 : index
    %c0_7 = arith.constant 0 : index
    %c0_8 = arith.constant 0 : index
    %9 = vector.load %arg4[%c0_6, %c0_7, %c0_8] : memref<1x16x32xf32, #tpu.memory_space<vmem>>, vector<1x16x32xf32>
    tpu.vector_store %arg4[%c0_6, %c0_7, %c0_8], %8 {strides = array<i32>} : memref<1x16x32xf32, #tpu.memory_space<vmem>>, vector<1x16x32xf32>,
    return
  }
  func.func @transform_0(%arg0: i32) -> (i32, i32, i32) {
    %c0_i32 = arith.constant 0 : i32
    %c0_i32_0 = arith.constant 0 : i32
    %c0_i32_1 = arith.constant 0 : i32
    return %arg0, %c0_i32, %c0_i32_0 : i32, i32, i32
  }
  func.func @transform_1(%arg0: i32) -> (i32, i32) {
    %c0_i32 = arith.constant 0 : i32
    %c0_i32_0 = arith.constant 0 : i32
    %c0_i32_1 = arith.constant 0 : i32
    return %c0_i32, %c0_i32_0 : i32, i32
  }
  func.func @transform_2(%arg0: i32) -> (i32, i32) {
    %c0_i32 = arith.constant 0 : i32
    %c0_i32_0 = arith.constant 0 : i32
    %c0_i32_1 = arith.constant 0 : i32
    return %c0_i32, %c0_i32_0 : i32, i32
  }
  func.func @transform_3(%arg0: i32) -> (i32, i32, i32) {
    %c0_i32 = arith.constant 0 : i32
    %c0_i32_0 = arith.constant 0 : i32
    %c0_i32_1 = arith.constant 0 : i32
    return %arg0, %c0_i32, %c0_i32_0 : i32, i32, i32
  }
}

</mosaic_0001>

<llo_original>
// kernel: tpu_custom_call.1
$region0: #{tpu_custom_call.1}
  #allocation0 [shape = 'u32[]', space=smem, size = 0x4, offset = 0x4, fixed_abs, tag = 'smem constant byte address 0x4 - core index']
  #allocation1 [shape = 'u32[144,128]{1,0:T(1,128)}', space=vmem, size = 0x12000, scoped, tag = 'internal scratch']
  %s0 = inlined_call_operand.vmem [shape: f32[2,16,64], index: 0, kind: input, shape index: {}]
  %s1 = inlined_call_operand.vmem [shape: bf16[64,32], index: 1, kind: input, shape index: {}]
  %s2 = inlined_call_operand.vmem [shape: f32[16,32], index: 2, kind: input, shape index: {}]
  %s3 = inlined_call_operand.hbm [shape: f32[2,16,32], index: 3, kind: output, shape index: {}]
  %s4 = sld [smem:[#allocation0]]
  $region45: #{tpu_custom_call.1} parent=0
    _
  %s6 = ssub.s32 1, %s4
  %s7 = scalar_select 0, %s6, %s4
  $region1: #{tpu_custom_call.1} parent=0
    #allocation2 [shape = 'u8[16384]{0}', space=vmem, size = 0x4000, scoped, tag = 'output window, operand 0']
    #allocation3 [shape = 's32[2]{0}', space=sflag, size = 0x8, scoped, tag = 'scoped memory for tpu_custom_call.1']
    %8 = vsyncpa [#allocation3], 0
    %s9 = scalar_lea.sflag [#allocation3], 1
    %10 = vsyncpa %s9, 0
    loop: start=0, step=1, limit=4
    $region2: #{tpu_custom_call.1} parent=1 // loop_pre_header
      _
    $region3: #{tpu_custom_call.1} parent=1 // loop_header
      %s12 = sphi 0, %s16
      %p13 = scmp.ge.s32.totalorder %s12, 4
      %s22 = sphi 0, %s24
      %s25 = sphi 0, %s22
      %s26 = sphi 0, %s25
      %s42 = sphi 0, %s26
      %s46 = sphi 0, %s46
      %s48 = sphi 0, %s46
      %s49 = sphi 0, %s48
      %s63 = sphi 0, %s49
      %s67 = sphi 0, %s67
      %s69 = sphi 0, %s67
      %s70 = sphi 0, %s69
      %s84 = sphi 0, %s70
      %s90 = sphi 0, %s92
      %s93 = sphi 0, %s90
      %s94 = sphi 0, %s93
      %s110 = sphi 0, %s94
    $region4: #{tpu_custom_call.1} parent=1 // loop_header_branch
      %15 = sbr.rel (%p13) target = $region8
    $region5: #{tpu_custom_call.1} parent=1 // loop_body
      %s17 = ssub.s32 %s12, 1
      %s18 = ssub.s32 %s12, 2
      %s19 = sadd.s32 %s12, 1
      %s20 = ssub.s32 %s12, %s19
      %p21 = scmp.eq.s32.totalorder %s20, 0
      %s23 = sadd.s32 %s22, 1
      %s24 = scalar_select %p21, %s22, %s23
      %p27 = pneg %p21
      %p28 = scmp.eq.s32.totalorder %s12, 1
      %p29 = por %p27, %p28
      %p30 = scmp.ne.s32.totalorder %s22, %s25
      %p31 = scmp.eq.s32.totalorder %s12, 0
      %p32 = por %p30, %p31
      %p33 = scmp.ne.s32.totalorder %s22, %s25
      %p34 = scmp.eq.s32.totalorder %s17, 1
      %p35 = por %p33, %p34
      %p36 = scmp.ne.s32.totalorder %s25, %s26
      %p37 = scmp.eq.s32.totalorder %s17, 0
      %p38 = por %p36, %p37
      %p39 = scmp.ne.s32.totalorder %s25, %s26
      %p40 = scmp.eq.s32.totalorder %s18, 1
      %p41 = por %p39, %p40
      %p43 = scmp.ne.s32.totalorder %s26, %s42
      %p44 = scmp.eq.s32.totalorder %s18, 0
      %p45 = por %p43, %p44
      %s47 = sadd.s32 %s46, 1
      %p50 = scmp.eq.s32.totalorder %s12, 1
      %p51 = scmp.ne.s32.totalorder %s46, %s48
      %p52 = scmp.eq.s32.totalorder %s12, 0
      %p53 = por %p51, %p52
      %p54 = scmp.ne.s32.totalorder %s46, %s48
      %p55 = scmp.eq.s32.totalorder %s17, 1
      %p56 = por %p54, %p55
      %p57 = scmp.ne.s32.totalorder %s48, %s49
      %p58 = scmp.eq.s32.totalorder %s17, 0
      %p59 = por %p57, %p58
      %p60 = scmp.ne.s32.totalorder %s48, %s49
      %p61 = scmp.eq.s32.totalorder %s18, 1
      %p62 = por %p60, %p61
      %p64 = scmp.ne.s32.totalorder %s49, %s63
      %p65 = scmp.eq.s32.totalorder %s18, 0
      %p66 = por %p64, %p65
      %s68 = sadd.s32 %s67, 1
      %p71 = scmp.eq.s32.totalorder %s12, 1
      %p72 = scmp.ne.s32.totalorder %s67, %s69
      %p73 = scmp.eq.s32.totalorder %s12, 0
      %p74 = por %p72, %p73
      %p75 = scmp.ne.s32.totalorder %s67, %s69
      %p76 = scmp.eq.s32.totalorder %s17, 1
      %p77 = por %p75, %p76
      %p78 = scmp.ne.s32.totalorder %s69, %s70
      %p79 = scmp.eq.s32.totalorder %s17, 0
      %p80 = por %p78, %p79
      %p81 = scmp.ne.s32.totalorder %s69, %s70
      %p82 = scmp.eq.s32.totalorder %s18, 1
      %p83 = por %p81, %p82
      %p85 = scmp.ne.s32.totalorder %s70, %s84
      %p86 = scmp.eq.s32.totalorder %s18, 0
      %p87 = por %p85, %p86
      %s88 = ssub.s32 %s12, %s19
      %p89 = scmp.eq.s32.totalorder %s88, 0
      %s91 = sadd.s32 %s90, 1
      %s92 = scalar_select %p89, %s90, %s91
      %p95 = pneg %p89
      %p96 = scmp.eq.s32.totalorder %s12, 1
      %p97 = por %p95, %p96
      %p98 = scmp.ne.s32.totalorder %s90, %s93
      %p99 = scmp.eq.s32.totalorder %s12, 0
      %p100 = por %p98, %p99
      %p101 = scmp.ne.s32.totalorder %s90, %s93
      %p102 = scmp.eq.s32.totalorder %s17, 1
      %p103 = por %p101, %p102
      %p104 = scmp.ne.s32.totalorder %s93, %s94
      %p105 = scmp.eq.s32.totalorder %s17, 0
      %p106 = por %p104, %p105
      %p107 = scmp.ne.s32.totalorder %s93, %s94
      %p108 = scmp.eq.s32.totalorder %s18, 1
      %p109 = por %p107, %p108
      %p111 = scmp.ne.s32.totalorder %s94, %s110
      %p112 = scmp.eq.s32.totalorder %s18, 0
      %p113 = por %p111, %p112
      %p114 = scmp.le.s32.totalorder 1, %s12
      %p115 = scmp.lt.s32.totalorder %s12, 3
      %p116 = pnand %p114, %p115
      %p117 = pneg %p116
      // Predicated region
      $region9: #{tpu_custom_call.1} parent=5 // pred_check
        _
      $region10: #{tpu_custom_call.1} parent=5 // pred_check_branch
        %119 = sbr.rel (%p116) target = $region12
      $region11: #{tpu_custom_call.1} parent=5 // pred_region
        %s120 = ssub.s32 %s12, 1
        // Predicated region
        $region13: #{tpu_custom_call.1} parent=11 // pred_check
          %p121 = pneg %p59
        $region14: #{tpu_custom_call.1} parent=11 // pred_check_branch
          %123 = sbr.rel (%p121) target = $region16
        $region15: #{tpu_custom_call.1} parent=11 // pred_region
          _
        $region16: #{tpu_custom_call.1} parent=11 // pred_fallthru
          _
        // Predicated region
        $region17: #{tpu_custom_call.1} parent=11 // pred_check
          %p124 = pneg %p80
        $region18: #{tpu_custom_call.1} parent=11 // pred_check_branch
          %126 = sbr.rel (%p124) target = $region20
        $region19: #{tpu_custom_call.1} parent=11 // pred_region
          _
        $region20: #{tpu_custom_call.1} parent=11 // pred_fallthru
          _
      $region12: #{tpu_custom_call.1} parent=5 // pred_fallthru
        _
      %p127 = scmp.lt.s32.totalorder %s12, 2
      // Predicated region
      $region21: #{tpu_custom_call.1} parent=5 // pred_check
        %p128 = pneg %p127
      $region22: #{tpu_custom_call.1} parent=5 // pred_check_branch
        %130 = sbr.rel (%p128) target = $region24
      $region23: #{tpu_custom_call.1} parent=5 // pred_region
        // Predicated region
        $region25: #{tpu_custom_call.1} parent=23 // pred_check
          %p131 = pneg %p32
        $region26: #{tpu_custom_call.1} parent=23 // pred_check_branch
          %133 = sbr.rel (%p131) target = $region28
        $region27: #{tpu_custom_call.1} parent=23 // pred_region
          %p134 = scmp.lt.s32.totalorder %s12, 1
          %s135 = scalar_select %p134, %s12, 1
          %s136 = smul.addr %s135, 2
          %s137 = smul.addr %s136, 8
          %s138 = scalar_lea.vmem %s0, %s137
        $region28: #{tpu_custom_call.1} parent=23 // pred_fallthru
          _
      $region24: #{tpu_custom_call.1} parent=5 // pred_fallthru
        _
      %p139 = scmp.le.s32.totalorder 1, %s12
      %p140 = scmp.lt.s32.totalorder %s12, 3
      %p141 = pnand %p139, %p140
      %p142 = pneg %p141
      // Predicated region
      $region29: #{tpu_custom_call.1} parent=5 // pred_check
        _
      $region30: #{tpu_custom_call.1} parent=5 // pred_check_branch
        %144 = sbr.rel (%p141) target = $region32
      $region31: #{tpu_custom_call.1} parent=5 // pred_region
        %s145 = ssub.s32 %s12, 1
        %p146 = scmp.lt.s32.totalorder %s17, 1
        %s147 = scalar_select %p146, %s17, 1
        %s148 = smul.addr %s147, 2
        %s149 = smul.addr %s148, 8
        %s150 = scalar_lea.vmem %s0, %s149
        %p151 = pneg %p38
        %p152 = pneg %p35
        %p153 = pneg %p59
        %p154 = pneg %p56
        %p155 = pneg %p80
        %p156 = pneg %p77
        %p157 = pneg %p106
        %p158 = pneg %p103
        %s159 = sand.u32 %s93, 1
        %s160 = scalar_lea.sflag [#allocation3], %s159
        %s161 = sand.u32 %s93, 1
        %s162 = smul.addr %s161, 16
        %s163 = scalar_lea.vmem [#allocation2], %s162
        %p164 = scmp.lt.s32.totalorder %s17, 1
        %s165 = scalar_select %p164, %s17, 1
        %s166 = smul.addr %s165, 2
        %s167 = smul.addr %s166, 8
        %s168 = scalar_lea.vmem %s0, %s167
        %v170 = vld [vmem:[%s168] sm:$0xff]
        %v171 = vld [vmem:[%s168 + $0x8] sm:$0xff]
        %v172 = vpack.c.bf16 %v171, %v170
        %v173 = vld [vmem:[%s1] sm:$0xf]
        %v174 = vld [vmem:[%s1 + $0x4] sm:$0xf]
        %v175 = vld [vmem:[%s1 + $0x8] sm:$0xf]
        %v176 = vld [vmem:[%s1 + $0xc] sm:$0xf]
        %v177 = vld [vmem:[%s1 + $0x10] sm:$0xf]
        %v178 = vld [vmem:[%s1 + $0x14] sm:$0xf]
        %v179 = vld [vmem:[%s1 + $0x18] sm:$0xf]
        %v180 = vld [vmem:[%s1 + $0x1c] sm:$0xf]
        %v189 = vunpack.c.l.b16 %v173
        %v190 = vunpack.c.l.b16 %v174
        %v191 = vunpack.c.l.b16 %v175
        %v192 = vunpack.c.l.b16 %v176
        %v193 = vunpack.c.l.b16 %v177
        %v194 = vunpack.c.l.b16 %v178
        %v195 = vunpack.c.l.b16 %v179
        %v196 = vunpack.c.l.b16 %v180
        %v197 = vpack.c.b16 %v190, %v189
        %v198 = vpack.c.b16 %v192, %v191
        %v199 = vpack.c.b16 %v194, %v193
        %v200 = vpack.c.b16 %v196, %v195
        %vm205 = vcmask 523264
        %v207 = vsel %vm205, %v172, 0
        %209 = vmatprep.subr.bf16.mxu0 0
        %210 = vmatpush1.bf16.msra.mxu0 %v197
        %211 = vmatprep.subr.bf16.mxu0 0
        %212 = vmatpush1.bf16.msra.mxu0 %v198
        %213 = vmatprep.subr.bf16.mxu0 0
        %214 = vmatpush1.bf16.msra.mxu0 %v199
        %215 = vmatprep.subr.bf16.mxu0 0
        %216 = vmatpush1.bf16.msra.mxu0 %v200
        %217 = vmatprep.subr.bf16.mxu0 0
        %218 = vmatpush1.bf16.msra.mxu0 0
        %219 = vmatprep.subr.bf16.mxu0 0
        %220 = vmatpush1.bf16.msra.mxu0 0
        %221 = vmatprep.subr.bf16.mxu0 0
        %222 = vmatpush1.bf16.msra.mxu0 0
        %223 = vmatprep.subr.bf16.mxu0 0
        %224 = vmatpush1.bf16.msra.mxu0 0
        %225 = vmatprep.subr.bf16.mxu0 0
        %226 = vmatpush1.bf16.msra.mxu0 0
        %227 = vmatprep.subr.bf16.mxu0 0
        %228 = vmatpush1.bf16.msra.mxu0 0
        %229 = vmatprep.subr.bf16.mxu0 0
        %230 = vmatpush1.bf16.msra.mxu0 0
        %231 = vmatprep.subr.bf16.mxu0 0
        %232 = vmatpush1.bf16.msra.mxu0 0
        %233 = vmatprep.subr.bf16.mxu0 0
        %234 = vmatpush1.bf16.msra.mxu0 0
        %235 = vmatprep.subr.bf16.mxu0 0
        %236 = vmatpush1.bf16.msra.mxu0 0
        %237 = vmatprep.subr.bf16.mxu0 0
        %238 = vmatpush1.bf16.msra.mxu0 0
        %239 = vmatprep.subr.bf16.mxu0 0
        %240 = vmatpush1.bf16.msra.mxu0 0
        %241 = vmatprep.mubr.bf16.mxu0 0
        %242 = vmatmul.mubr.bf16.gmra.mrb[0].mxu0 %v207
        %v243 = vpop.f32.mrb[0].mxu0
        %v244 = vadd.f32 0.0, %v243
        %v245 = vpop.f32.mrb[0].mxu0
        %v246 = vpop.f32.mrb[0].mxu0
        %v247 = vadd.f32 0.0, %v246
        %v248 = vpop.f32.mrb[0].mxu0
        %249 = vdwg.mxu0
        %v250 = vld [vmem:[%s2] sm:$0xff]
        %v251 = vld [vmem:[%s2 + $0x8] sm:$0xff]
        %v252 = vadd.f32 %v244, %v250
        %v253 = vadd.f32 %v247, %v251
        %vm254 = vcmask 261120
        %255 = vst.msk [vmem:[%s163] sm:$0xff] %vm254, %v252
        %256 = vst.msk [vmem:[%s163 + $0x8] sm:$0xff] %vm254, %v253
        %s257 = sand.u32 %s93, 1
        %s258 = scalar_lea.sflag [#allocation3], %s257
        %s259 = sand.u32 %s93, 1
        %s260 = smul.addr %s259, 16
        %s261 = scalar_lea.vmem [#allocation2], %s260
        // Predicated region
        $region33: #{tpu_custom_call.1} parent=31 // pred_check
          %p262 = pneg %p103
        $region34: #{tpu_custom_call.1} parent=31 // pred_check_branch
          %264 = sbr.rel (%p262) target = $region36
        $region35: #{tpu_custom_call.1} parent=31 // pred_region
          %s266 = ssub.s32 256, 256
          %267 = vsyncadd %s258, %s266
          %s268 = smul.addr %s17, 2
          %s269 = smul.addr %s268, 128
          %s270 = scalar_lea.hbm %s3, %s269
          %s271 = sshll.u32 %s261, 4
          %s272 = int_to_ptr.vmem [resolvable:$true] %s271
          %277 = dma.vmem_to_hbm [thread:$0]  %s272, 256, %s270, %s258, 128, 128, 8
        $region36: #{tpu_custom_call.1} parent=31 // pred_fallthru
          _
      $region32: #{tpu_custom_call.1} parent=5 // pred_fallthru
        _
      %p278 = scmp.le.s32.totalorder 2, %s12
      // Predicated region
      $region37: #{tpu_custom_call.1} parent=5 // pred_check
        %p279 = pneg %p278
      $region38: #{tpu_custom_call.1} parent=5 // pred_check_branch
        %281 = sbr.rel (%p279) target = $region40
      $region39: #{tpu_custom_call.1} parent=5 // pred_region
        %s282 = ssub.s32 %s12, 2
        // Predicated region
        $region41: #{tpu_custom_call.1} parent=39 // pred_check
          %p283 = pneg %p109
        $region42: #{tpu_custom_call.1} parent=39 // pred_check_branch
          %285 = sbr.rel (%p283) target = $region44
        $region43: #{tpu_custom_call.1} parent=39 // pred_region
          %s286 = sand.u32 %s94, 1
          %s287 = scalar_lea.sflag [#allocation3], %s286
          %s288 = sand.u32 %s94, 1
          %s289 = smul.addr %s288, 16
          %s290 = scalar_lea.vmem [#allocation2], %s289
          %291 = dma.done %s287, 256
        $region44: #{tpu_custom_call.1} parent=39 // pred_fallthru
          _
      $region40: #{tpu_custom_call.1} parent=5 // pred_fallthru
        _
    $region6: #{tpu_custom_call.1} parent=1 // loop_footer
      %s16 = sadd.s32 1, %s12
    $region7: #{tpu_custom_call.1} parent=1 // loop_footer_branch
      %11 = sbr.rel target = $region3
    $region8: #{tpu_custom_call.1} parent=1 // loop_exit
      _
    %292 = vsyncpa [#allocation3], 1
    %s293 = scalar_lea.sflag [#allocation3], 1
    %294 = vsyncpa %s293, 1

</llo_original>
